<compile_context>
chip_gen: v7x
topology: tpu7x:2x2x1
jax: 0.10.0
libtpu: 0.0.40
codegen_flags: <defaults>
</compile_context>

<pallas_src>
import functools

import jax
import jax.numpy as jnp
import numpy as np
from jax import lax
from jax.experimental import pallas as pl
from jax.experimental.pallas import tpu as pltpu


def _cqc_kernel(chosen_ref, xr_ref, xc_ref, loss_ref, *, n_real, tau):
    tile_m = xr_ref.shape[0]
    n_pad = xc_ref.shape[1]
    t = pl.program_id(1)
    inv_tau = jnp.float32(1.0 / tau)
    row0 = t * tile_m

    # cosine similarities: unit-norm bf16 rows x (D, N) bf16 operand, f32 MXU acc.
    cos = lax.dot_general(xr_ref[...], xc_ref[...],
                          (((1,), (0,)), ((), ())),
                          preferred_element_type=jnp.float32)        # (TM, N_pad)

    row_ids = row0 + lax.broadcasted_iota(jnp.int32, (tile_m, 1), 0)  # (TM, 1)
    col_ids = lax.broadcasted_iota(jnp.int32, (tile_m, n_pad), 1)     # (TM, N_pad)

    # LSE over every column except the diagonal (== packed [pos, negs...] row).
    valid = col_ids != row_ids
    if n_pad != n_real:                      # static branch: padded columns masked
        valid = valid & (col_ids < n_real)
    masked = jnp.where(valid, cos, jnp.float32(-1e30))

    if tau >= 0.025:
        # static bound: every cosine <= 1  =>  every logit <= 1/tau
        p = jnp.exp((masked - jnp.float32(1.0)) * inv_tau)
        lse = inv_tau + jnp.log(jnp.sum(p, axis=1, keepdims=True))    # (TM, 1)
    else:
        # tiny tau: fall back to a dynamic per-row max to avoid f32 exp underflow
        m = jnp.max(masked, axis=1, keepdims=True)
        p = jnp.exp((masked - m) * inv_tau)
        lse = m * inv_tau + jnp.log(jnp.sum(p, axis=1, keepdims=True))

    # label-indexed entry of the packed row, via the precomputed column index
    chosen_col = chosen_ref[...]                                      # (TM, 1) i32
    chosen = jnp.sum(jnp.where(col_ids == chosen_col, cos, 0.0),
                     axis=1, keepdims=True) * inv_tau                 # (TM, 1)

    ce_rows = lse - chosen                                            # (TM, 1)
    if n_pad != n_real:                      # static branch: padded rows excluded
        ce_rows = jnp.where(row_ids < n_real, ce_rows, 0.0)
    ce = jnp.sum(ce_rows)              # CrossEntropyLoss(reduction='sum') partial

    @pl.when(t == 0)
    def _():
        loss_ref[...] = jnp.zeros_like(loss_ref)
    loss_ref[...] += ce


def _vmem_estimate(tile_m, n_pad, d):
    slabs = 6 * tile_m * n_pad * 4        # live (TM, N_pad) f32/i32 temporaries
    xr_in = 2 * tile_m * d * 2            # double-buffered (TM, D) bf16 block
    xc_in = 2 * d * n_pad * 2             # (D, N_pad) bf16 block (2 buffers)
    misc = 2 * tile_m * 4 + (1 << 20)     # chosen block + slack
    return slabs + xr_in + xc_in + misc


def _pick_tile(n_pad, d, budget):
    for tm in (512, 256, 128):
        if n_pad % tm == 0 and _vmem_estimate(tm, n_pad, d) <= budget:
            return tm
    return 128                             # n_pad is always a multiple of 128


def cqc_loss(Xa, Xb, Za, Zb, labels, mask_neg, *, batch_size, tau_cqc):
    n = 2 * batch_size
    d = Xa.shape[1]

    x_pair = jnp.stack(
        [jnp.concatenate([Xa, Zb], axis=0),
         jnp.concatenate([Xb, Za], axis=0)], axis=0).astype(jnp.float32)   # (2, N, D)

    # Normalize once in the wrapper (O(N*D)); keep rows UNIT-norm in bf16 so bf16
    # quantization error on the logits does not scale with 1/tau.
    # NOTE: clamps each ||x|| at 1e-4, whereas torch CosineSimilarity clamps the
    # product ||a||*||b|| at 1e-8 -- only differs for near-zero rows.
    sq = jnp.sum(x_pair * x_pair, axis=-1, keepdims=True)
    inv = lax.rsqrt(jnp.maximum(sq, jnp.float32(1e-8)))
    xn = (x_pair * inv).astype(jnp.bfloat16)                               # (2, N, D)

    # Precompute the chosen column per row (replaces an in-kernel O(N^3) rank
    # matmul). label 0 -> the positive column (i+B / i-B); label l>0 -> the
    # (l-1)-th negative column of mask_neg in column order.
    labels_i = labels.astype(jnp.int32).reshape(n)
    rows = jnp.arange(n, dtype=jnp.int32)
    pos_col = jnp.where(rows < batch_size, rows + batch_size, rows - batch_size)
    mask_i = mask_neg.astype(jnp.int32)
    cum = jnp.cumsum(mask_i, axis=1)                                       # inclusive
    hit = (mask_i > 0) & (cum == labels_i[:, None])
    neg_col = jnp.argmax(hit, axis=1).astype(jnp.int32)
    chosen_col = jnp.where(labels_i == 0, pos_col, neg_col).reshape(n, 1)  # (N, 1)

    # Pad N up to a multiple of 128 for clean (16,128)/(8,128) tiling; padded
    # rows / columns are masked out inside the kernel.
    n_pad = max(128, ((n + 127) // 128) * 128)
    if n_pad != n:
        xn = jnp.pad(xn, ((0, 0), (0, n_pad - n), (0, 0)))
        chosen_col = jnp.pad(chosen_col, ((0, n_pad - n), (0, 0)))

    xr = xn                                    # (2, N_pad, D) bf16   (LHS row tiles)
    xc = jnp.transpose(xn, (0, 2, 1))          # (2, D, N_pad) bf16   (hoisted RHS)

    # Generation-aware VMEM budgeting (64 MiB per core on v7x, 128 MiB v5e/v6e).
    vmem_cap = 64 * 1024 * 1024
    try:
        vmem_cap = int(pltpu.get_tpu_info().vmem_capacity_bytes)
    except Exception:
        pass
    tile_m = _pick_tile(n_pad, d, int(0.6 * vmem_cap))
    vmem_est = _vmem_estimate(tile_m, n_pad, d)
    vmem_limit = int(min(int(0.9 * vmem_cap), max(vmem_est + (8 << 20), 32 << 20)))

    kernel = functools.partial(_cqc_kernel, n_real=n, tau=float(tau_cqc))

    out = pl.pallas_call(
        kernel,
        out_shape=jax.ShapeDtypeStruct((2, 1, 1), jnp.float32),
        grid=(2, n_pad // tile_m),
        in_specs=[
            pl.BlockSpec((tile_m, 1), lambda p, t: (t, 0)),
            pl.BlockSpec((pl.Squeezed(), tile_m, d), lambda p, t: (p, t, 0)),
            pl.BlockSpec((pl.Squeezed(), d, n_pad), lambda p, t: (p, 0, 0)),
        ],
        out_specs=pl.BlockSpec((1, 1, 1), lambda p, t: (p, 0, 0)),
        compiler_params=pltpu.CompilerParams(
            dimension_semantics=("parallel", "arbitrary"),
            vmem_limit_bytes=vmem_limit),
    )(chosen_col, xr, xc)
    return jnp.sum(out) / (2 * batch_size)


def _reference(Xa, Xb, Za, Zb, labels, mask, batch_size, tau):
    """NumPy re-implementation mirroring the PyTorch module exactly (f32)."""
    n = 2 * batch_size

    def ce_part(X):
        norms = np.sqrt((X * X).sum(-1))
        S = (X @ X.T) / np.maximum(norms[:, None] * norms[None, :], 1e-8)
        pos = np.concatenate([np.diagonal(S, batch_size),
                              np.diagonal(S, -batch_size)]).reshape(n, 1)
        neg = S[mask].reshape(n, -1)
        logits = np.concatenate([pos, neg], axis=1) / tau
        m = logits.max(axis=1, keepdims=True)
        lse = m[:, 0] + np.log(np.exp(logits - m).sum(axis=1))
        chosen = logits[np.arange(n), labels]
        return (lse - chosen).sum()

    XaZb = np.concatenate([Xa, Zb], 0)
    XbZa = np.concatenate([Xb, Za], 0)
    return (ce_part(XaZb) + ce_part(XbZa)) / (2 * batch_size)


if __name__ == "__main__":
    B, D = 4, 32
    N = 2 * B
    tau = 0.5

    key = jax.random.PRNGKey(0)
    ka, kb, kza, kzb = jax.random.split(key, 4)
    Xa = jax.random.normal(ka, (B, D), jnp.float32)
    Xb = jax.random.normal(kb, (B, D), jnp.float32)
    Za = jax.random.normal(kza, (B, D), jnp.float32)
    Zb = jax.random.normal(kzb, (B, D), jnp.float32)

    # Standard SPQ negative mask: all pairs except the diagonal and the
    # (i, i+B) / (i+B, i) positive pairs.
    mask = np.ones((N, N), dtype=bool)
    np.fill_diagonal(mask, False)
    for i in range(B):
        mask[i, B + i] = False
        mask[B + i, i] = False
    labels = np.zeros((N,), dtype=np.int32)   # positive is always class 0

    loss = cqc_loss(Xa, Xb, Za, Zb, jnp.asarray(labels), jnp.asarray(mask),
                    batch_size=B, tau_cqc=tau)
    loss = jax.block_until_ready(loss)

    ref = _reference(np.asarray(Xa), np.asarray(Xb), np.asarray(Za),
                     np.asarray(Zb), labels, mask, B, tau)
    # bf16 MXU operands introduce ~1e-3 relative error vs the f32 reference.
    assert np.allclose(float(loss), float(ref), rtol=2e-2, atol=2e-2), \
        (float(loss), float(ref))
    print("KERNEL_OK")
</pallas_src>

<mosaic_0001>
module attributes {stable_mosaic.version = 11 : i64} {
  func.func @_cqc_kernel(%arg0: i32, %arg1: i32, %arg2: memref<128x1xi32, #tpu.memory_space<vmem>>, %arg3: memref<1x128x32xbf16, #tpu.memory_space<vmem>>, %arg4: memref<1x32x128xbf16, #tpu.memory_space<vmem>>, %arg5: memref<1x1x1xf32, #tpu.memory_space<vmem>>) attributes {dimension_semantics = [#tpu.dimension_semantics<parallel>, #tpu.dimension_semantics<arbitrary>], iteration_bounds = array<i64: 2, 1>, scalar_prefetch = 0 : i64, scratch_operands = 0 : i64, tpu.core_type = #tpu.core_type<tc>, window_params = [{transform_indices = @transform_0, window_bounds = array<i64: 128, 1>}, {transform_indices = @transform_1, window_bounds = array<i64: 1, 128, 32>}, {transform_indices = @transform_2, window_bounds = array<i64: 1, 32, 128>}, {transform_indices = @transform_3, window_bounds = array<i64: 1, 1, 1>}]} {
    %c128_i32 = arith.constant 128 : i32
    %0 = arith.muli %arg1, %c128_i32 : i32
    %c0 = arith.constant 0 : index
    %c0_0 = arith.constant 0 : index
    %c0_1 = arith.constant 0 : index
    %1 = vector.load %arg3[%c0, %c0_0, %c0_1] : memref<1x128x32xbf16, #tpu.memory_space<vmem>>, vector<1x128x32xbf16>
    %2 = vector.shape_cast %1 : vector<1x128x32xbf16> to vector<128x32xbf16>
    %c0_2 = arith.constant 0 : index
    %c0_3 = arith.constant 0 : index
    %c0_4 = arith.constant 0 : index
    %3 = vector.load %arg4[%c0_2, %c0_3, %c0_4] : memref<1x32x128xbf16, #tpu.memory_space<vmem>>, vector<1x32x128xbf16>
    %4 = vector.shape_cast %3 : vector<1x32x128xbf16> to vector<32x128xbf16>
    %cst = arith.constant dense<0.000000e+00> : vector<128x128xf32>
    %5 = tpu.matmul %2, %4, %cst {dimension_numbers = #tpu.dot_dimension_numbers<[1], [0], [0], [1], [0, 0, 1, 1], [], []>} : vector<128x32xbf16>, vector<32x128xbf16>, vector<128x128xf32> -> vector<128x128xf32>
    %6 = tpu.iota {dimensions = array<i32: 0>} : vector<128x1xi32>
    %7 = vector.broadcast %0 : i32 to vector<128x1xi32>
    %8 = arith.addi %7, %6 : vector<128x1xi32>
    %9 = tpu.iota {dimensions = array<i32: 1>} : vector<128x128xi32>
    %10 = vector.broadcast %8 : vector<128x1xi32> to vector<128x128xi32>
    %11 = arith.cmpi ne, %9, %10 : vector<128x128xi32>
    %c8_i32 = arith.constant 8 : i32
    %12 = vector.broadcast %c8_i32 : i32 to vector<128x128xi32>
    %13 = arith.cmpi slt, %9, %12 : vector<128x128xi32>
    %14 = arith.andi %11, %13 : vector<128x128xi1>
    %cst_5 = arith.constant -1.000000e+30 : f32
    %15 = vector.broadcast %cst_5 : f32 to vector<128x128xf32>
    %16 = arith.select %14, %5, %15 : vector<128x128xi1>, vector<128x128xf32>
    %cst_6 = arith.constant 1.000000e+00 : f32
    %17 = vector.broadcast %cst_6 : f32 to vector<128x128xf32>
    %18 = arith.subf %16, %17 : vector<128x128xf32>
    %cst_7 = arith.constant 2.000000e+00 : f32
    %19 = vector.broadcast %cst_7 : f32 to vector<128x128xf32>
    %20 = arith.mulf %18, %19 : vector<128x128xf32>
    %21 = math.exp %20 : vector<128x128xf32>
    %cst_8 = arith.constant dense<0.000000e+00> : vector<128xf32>
    %22 = vector.multi_reduction <add>, %21, %cst_8 [1] : vector<128x128xf32> to vector<128xf32>
    %23 = vector.shape_cast %22 : vector<128xf32> to vector<128x1xf32>
    %24 = math.log %23 : vector<128x1xf32>
    %cst_9 = arith.constant 2.000000e+00 : f32
    %25 = vector.broadcast %cst_9 : f32 to vector<128x1xf32>
    %26 = arith.addf %25, %24 : vector<128x1xf32>
    %c0_10 = arith.constant 0 : index
    %c0_11 = arith.constant 0 : index
    %27 = vector.load %arg2[%c0_10, %c0_11] : memref<128x1xi32, #tpu.memory_space<vmem>>, vector<128x1xi32>
    %28 = vector.broadcast %27 : vector<128x1xi32> to vector<128x128xi32>
    %29 = arith.cmpi eq, %9, %28 : vector<128x128xi32>
    %cst_12 = arith.constant 0.000000e+00 : f32
    %30 = vector.broadcast %cst_12 : f32 to vector<128x128xf32>
    %31 = arith.select %29, %5, %30 : vector<128x128xi1>, vector<128x128xf32>
    %cst_13 = arith.constant dense<0.000000e+00> : vector<128xf32>
    %32 = vector.multi_reduction <add>, %31, %cst_13 [1] : vector<128x128xf32> to vector<128xf32>
    %33 = vector.shape_cast %32 : vector<128xf32> to vector<128x1xf32>
    %cst_14 = arith.constant 2.000000e+00 : f32
    %34 = vector.broadcast %cst_14 : f32 to vector<128x1xf32>
    %35 = arith.mulf %33, %34 : vector<128x1xf32>
    %36 = arith.subf %26, %35 : vector<128x1xf32>
    %c8_i32_15 = arith.constant 8 : i32
    %37 = vector.broadcast %c8_i32_15 : i32 to vector<128x1xi32>
    %38 = arith.cmpi slt, %8, %37 : vector<128x1xi32>
    %cst_16 = arith.constant 0.000000e+00 : f32
    %39 = vector.broadcast %cst_16 : f32 to vector<128x1xf32>
    %40 = arith.select %38, %36, %39 : vector<128x1xi1>, vector<128x1xf32>
    %41 = vector.shape_cast %40 : vector<128x1xf32> to vector<1x128x1xf32>
    %cst_17 = arith.constant dense<0.000000e+00> : vector<1xf32>
    %42 = vector.multi_reduction <add>, %41, %cst_17 [1, 2] : vector<1x128x1xf32> to vector<1xf32>
    %43 = vector.shape_cast %42 : vector<1xf32> to vector<1x1x1xf32>
    %44 = vector.extract %43[0, 0, 0] : f32 from vector<1x1x1xf32>
    %c0_i32 = arith.constant 0 : i32
    %45 = arith.cmpi eq, %arg1, %c0_i32 : i32
    %46 = arith.extui %45 : i1 to i32
    %c0_i32_18 = arith.constant 0 : i32
    %47 = arith.cmpi ne, %46, %c0_i32_18 : i32
    scf.if %47 {
      %cst_25 = arith.constant 0.000000e+00 : f32
      %52 = vector.broadcast %cst_25 : f32 to vector<1x1x1xf32>
      %c0_26 = arith.constant 0 : index
      %c0_27 = arith.constant 0 : index
      %c0_28 = arith.constant 0 : index
      %53 = vector.load %arg5[%c0_26, %c0_27, %c0_28] : memref<1x1x1xf32, #tpu.memory_space<vmem>>, vector<1x1x1xf32>
      tpu.vector_store %arg5[%c0_26, %c0_27, %c0_28], %52 {strides = array<i32>} : memref<1x1x1xf32, #tpu.memory_space<vmem>>, vector<1x1x1xf32>,
    } else {
    }
    %c0_19 = arith.constant 0 : index
    %c0_20 = arith.constant 0 : index
    %c0_21 = arith.constant 0 : index
    %48 = vector.load %arg5[%c0_19, %c0_20, %c0_21] : memref<1x1x1xf32, #tpu.memory_space<vmem>>, vector<1x1x1xf32>
    %49 = vector.broadcast %44 : f32 to vector<1x1x1xf32>
    %50 = arith.addf %48, %49 : vector<1x1x1xf32>
    %c0_22 = arith.constant 0 : index
    %c0_23 = arith.constant 0 : index
    %c0_24 = arith.constant 0 : index
    %51 = vector.load %arg5[%c0_22, %c0_23, %c0_24] : memref<1x1x1xf32, #tpu.memory_space<vmem>>, vector<1x1x1xf32>
    tpu.vector_store %arg5[%c0_22, %c0_23, %c0_24], %50 {strides = array<i32>} : memref<1x1x1xf32, #tpu.memory_space<vmem>>, vector<1x1x1xf32>,
    return
  }
  func.func @transform_0(%arg0: i32, %arg1: i32) -> (i32, i32) {
    %c0_i32 = arith.constant 0 : i32
    %c0_i32_0 = arith.constant 0 : i32
    return %arg1, %c0_i32 : i32, i32
  }
  func.func @transform_1(%arg0: i32, %arg1: i32) -> (i32, i32, i32) {
    %c0_i32 = arith.constant 0 : i32
    %c0_i32_0 = arith.constant 0 : i32
    return %arg0, %arg1, %c0_i32 : i32, i32, i32
  }
  func.func @transform_2(%arg0: i32, %arg1: i32) -> (i32, i32, i32) {
    %c0_i32 = arith.constant 0 : i32
    %c0_i32_0 = arith.constant 0 : i32
    %c0_i32_1 = arith.constant 0 : i32
    return %arg0, %c0_i32, %c0_i32_0 : i32, i32, i32
  }
  func.func @transform_3(%arg0: i32, %arg1: i32) -> (i32, i32, i32) {
    %c0_i32 = arith.constant 0 : i32
    %c0_i32_0 = arith.constant 0 : i32
    %c0_i32_1 = arith.constant 0 : i32
    return %arg0, %c0_i32, %c0_i32_0 : i32, i32, i32
  }
}

</mosaic_0001>

<llo_original>
// kernel: tpu_custom_call.1
$region0: #{tpu_custom_call.1}
  #allocation0 [shape = 'u32[]', space=smem, size = 0x4, offset = 0x4, fixed_abs, tag = 'smem constant byte address 0x4 - core index']
  #allocation1 [shape = 'u32[144,128]{1,0:T(1,128)}', space=vmem, size = 0x12000, scoped, tag = 'internal scratch']
  %s0 = inlined_call_operand.vmem [shape: s32[128,1], index: 0, kind: input, shape index: {}]
  %s1 = inlined_call_operand.vmem [shape: bf16[2,128,32], index: 1, kind: input, shape index: {}]
  %s2 = inlined_call_operand.vmem [shape: bf16[2,32,128], index: 2, kind: input, shape index: {}]
  %s3 = inlined_call_operand.vmem [shape: f32[2,1,1], index: 3, kind: output, shape index: {}]
  %s4 = sld [smem:[#allocation0]]
  $region49: #{tpu_custom_call.1} parent=0
    _
  %s6 = ssub.s32 1, %s4
  %s7 = scalar_select 0, %s6, %s4
  loop: start=0, step=1, limit=4
  $region2: #{tpu_custom_call.1} parent=0 // loop_pre_header
    _
  $region3: #{tpu_custom_call.1} parent=0 // loop_header
    %s9 = sphi 0, %s13
    %p10 = scmp.ge.s32.totalorder %s9, 4
    %s16 = sphi 0, %s28
    %s17 = sphi 0, %s24
    %s18 = sphi 0, %s16
    %s19 = sphi 0, %s17
    %s20 = sphi 0, %s18
    %s21 = sphi 0, %s19
    %s31 = sphi 0, %s33
    %s34 = sphi 0, %s31
    %s35 = sphi 0, %s34
    %s51 = sphi 0, %s35
    %s59 = sphi 0, %s61
    %s62 = sphi 0, %s59
    %s63 = sphi 0, %s62
    %s79 = sphi 0, %s63
    %s85 = sphi 0, %s87
    %s88 = sphi 0, %s85
    %s89 = sphi 0, %s88
    %s105 = sphi 0, %s89
    %s111 = sphi 0, %s113
    %s114 = sphi 0, %s111
    %s115 = sphi 0, %s114
    %s131 = sphi 0, %s115
  $region4: #{tpu_custom_call.1} parent=0 // loop_header_branch
    %12 = sbr.rel (%p10) target = $region8
  $region5: #{tpu_custom_call.1} parent=0 // loop_body
    %s14 = ssub.s32 %s9, 1
    %s15 = ssub.s32 %s9, 2
    %s22 = sadd.s32 1, %s17
    %p23 = scmp.ge.s32.totalorder %s22, 1
    %s24 = scalar_select %p23, 0, %s22
    %s25 = sadd.s32 1, %s16
    %s26 = scalar_select %p23, %s25, %s16
    %p27 = scmp.ge.s32.totalorder %s26, 2
    %s28 = scalar_select %p27, 0, %s26
    %s29 = ssub.s32 %s17, %s24
    %p30 = scmp.eq.s32.totalorder %s29, 0
    %s32 = sadd.s32 %s31, 1
    %s33 = scalar_select %p30, %s31, %s32
    %p36 = pneg %p30
    %p37 = scmp.eq.s32.totalorder %s9, 1
    %p38 = por %p36, %p37
    %p39 = scmp.ne.s32.totalorder %s31, %s34
    %p40 = scmp.eq.s32.totalorder %s9, 0
    %p41 = por %p39, %p40
    %p42 = scmp.ne.s32.totalorder %s31, %s34
    %p43 = scmp.eq.s32.totalorder %s14, 1
    %p44 = por %p42, %p43
    %p45 = scmp.ne.s32.totalorder %s34, %s35
    %p46 = scmp.eq.s32.totalorder %s14, 0
    %p47 = por %p45, %p46
    %p48 = scmp.ne.s32.totalorder %s34, %s35
    %p49 = scmp.eq.s32.totalorder %s15, 1
    %p50 = por %p48, %p49
    %p52 = scmp.ne.s32.totalorder %s35, %s51
    %p53 = scmp.eq.s32.totalorder %s15, 0
    %p54 = por %p52, %p53
    %s55 = ssub.s32 %s16, %s28
    %s56 = ssub.s32 %s17, %s24
    %s57 = sor.u32 %s55, %s56
    %p58 = scmp.eq.s32.totalorder %s57, 0
    %s60 = sadd.s32 %s59, 1
    %s61 = scalar_select %p58, %s59, %s60
    %p64 = pneg %p58
    %p65 = scmp.eq.s32.totalorder %s9, 1
    %p66 = por %p64, %p65
    %p67 = scmp.ne.s32.totalorder %s59, %s62
    %p68 = scmp.eq.s32.totalorder %s9, 0
    %p69 = por %p67, %p68
    %p70 = scmp.ne.s32.totalorder %s59, %s62
    %p71 = scmp.eq.s32.totalorder %s14, 1
    %p72 = por %p70, %p71
    %p73 = scmp.ne.s32.totalorder %s62, %s63
    %p74 = scmp.eq.s32.totalorder %s14, 0
    %p75 = por %p73, %p74
    %p76 = scmp.ne.s32.totalorder %s62, %s63
    %p77 = scmp.eq.s32.totalorder %s15, 1
    %p78 = por %p76, %p77
    %p80 = scmp.ne.s32.totalorder %s63, %s79
    %p81 = scmp.eq.s32.totalorder %s15, 0
    %p82 = por %p80, %p81
    %s83 = ssub.s32 %s16, %s28
    %p84 = scmp.eq.s32.totalorder %s83, 0
    %s86 = sadd.s32 %s85, 1
    %s87 = scalar_select %p84, %s85, %s86
    %p90 = pneg %p84
    %p91 = scmp.eq.s32.totalorder %s9, 1
    %p92 = por %p90, %p91
    %p93 = scmp.ne.s32.totalorder %s85, %s88
    %p94 = scmp.eq.s32.totalorder %s9, 0
    %p95 = por %p93, %p94
    %p96 = scmp.ne.s32.totalorder %s85, %s88
    %p97 = scmp.eq.s32.totalorder %s14, 1
    %p98 = por %p96, %p97
    %p99 = scmp.ne.s32.totalorder %s88, %s89
    %p100 = scmp.eq.s32.totalorder %s14, 0
    %p101 = por %p99, %p100
    %p102 = scmp.ne.s32.totalorder %s88, %s89
    %p103 = scmp.eq.s32.totalorder %s15, 1
    %p104 = por %p102, %p103
    %p106 = scmp.ne.s32.totalorder %s89, %s105
    %p107 = scmp.eq.s32.totalorder %s15, 0
    %p108 = por %p106, %p107
    %s109 = ssub.s32 %s16, %s28
    %p110 = scmp.eq.s32.totalorder %s109, 0
    %s112 = sadd.s32 %s111, 1
    %s113 = scalar_select %p110, %s111, %s112
    %p116 = pneg %p110
    %p117 = scmp.eq.s32.totalorder %s9, 1
    %p118 = por %p116, %p117
    %p119 = scmp.ne.s32.totalorder %s111, %s114
    %p120 = scmp.eq.s32.totalorder %s9, 0
    %p121 = por %p119, %p120
    %p122 = scmp.ne.s32.totalorder %s111, %s114
    %p123 = scmp.eq.s32.totalorder %s14, 1
    %p124 = por %p122, %p123
    %p125 = scmp.ne.s32.totalorder %s114, %s115
    %p126 = scmp.eq.s32.totalorder %s14, 0
    %p127 = por %p125, %p126
    %p128 = scmp.ne.s32.totalorder %s114, %s115
    %p129 = scmp.eq.s32.totalorder %s15, 1
    %p130 = por %p128, %p129
    %p132 = scmp.ne.s32.totalorder %s115, %s131
    %p133 = scmp.eq.s32.totalorder %s15, 0
    %p134 = por %p132, %p133
    %p135 = scmp.le.s32.totalorder 1, %s9
    %p136 = scmp.lt.s32.totalorder %s9, 3
    %p137 = pnand %p135, %p136
    %p138 = pneg %p137
    // Predicated region
    $region9: #{tpu_custom_call.1} parent=5 // pred_check
      _
    $region10: #{tpu_custom_call.1} parent=5 // pred_check_branch
      %140 = sbr.rel (%p137) target = $region12
    $region11: #{tpu_custom_call.1} parent=5 // pred_region
      %s141 = ssub.s32 %s9, 1
      // Predicated region
      $region13: #{tpu_custom_call.1} parent=11 // pred_check
        %p142 = pneg %p47
      $region14: #{tpu_custom_call.1} parent=11 // pred_check_branch
        %144 = sbr.rel (%p142) target = $region16
      $region15: #{tpu_custom_call.1} parent=11 // pred_region
        %s145 = smul.u32 16, %s19
        %p146 = scmp.lt.s32.totalorder %s145, 15
        %s147 = scalar_select %p146, %s145, 15
        %s148 = smul.addr %s147, 8
        %s149 = scalar_lea.vmem %s0, %s148
        %s150 = smul.u32 16, %s19
      $region16: #{tpu_custom_call.1} parent=11 // pred_fallthru
        _
    $region12: #{tpu_custom_call.1} parent=5 // pred_fallthru
      _
    %p151 = scmp.lt.s32.totalorder %s9, 2
    // Predicated region
    $region17: #{tpu_custom_call.1} parent=5 // pred_check
      %p152 = pneg %p151
    $region18: #{tpu_custom_call.1} parent=5 // pred_check_branch
      %154 = sbr.rel (%p152) target = $region20
    $region19: #{tpu_custom_call.1} parent=5 // pred_region
      // Predicated region
      $region21: #{tpu_custom_call.1} parent=19 // pred_check
        %p155 = pneg %p69
      $region22: #{tpu_custom_call.1} parent=19 // pred_check_branch
        %157 = sbr.rel (%p155) target = $region24
      $region23: #{tpu_custom_call.1} parent=19 // pred_region
        %s158 = smul.u32 16, %s17
        %p159 = scmp.lt.s32.totalorder %s16, 1
        %s160 = scalar_select %p159, %s16, 1
        %p161 = scmp.lt.s32.totalorder %s158, 15
        %s162 = scalar_select %p161, %s158, 15
        %s163 = smul.addr %s160, 16
        %s164 = sadd.s32 %s162, %s163
        %s165 = smul.addr %s164, 4
        %s166 = scalar_lea.vmem %s1, %s165
        %s167 = smul.u32 16, %s17
      $region24: #{tpu_custom_call.1} parent=19 // pred_fallthru
        _
      // Predicated region
      $region25: #{tpu_custom_call.1} parent=19 // pred_check
        %p168 = pneg %p95
      $region26: #{tpu_custom_call.1} parent=19 // pred_check_branch
        %170 = sbr.rel (%p168) target = $region28
      $region27: #{tpu_custom_call.1} parent=19 // pred_region
        %p171 = scmp.lt.s32.totalorder %s16, 1
        %s172 = scalar_select %p171, %s16, 1
        %s173 = smul.addr %s172, 4
        %s174 = smul.addr %s173, 4
        %s175 = scalar_lea.vmem %s2, %s174
      $region28: #{tpu_custom_call.1} parent=19 // pred_fallthru
        _
    $region20: #{tpu_custom_call.1} parent=5 // pred_fallthru
      _
    %p176 = scmp.le.s32.totalorder 1, %s9
    %p177 = scmp.lt.s32.totalorder %s9, 3
    %p178 = pnand %p176, %p177
    %p179 = pneg %p178
    // Predicated region
    $region29: #{tpu_custom_call.1} parent=5 // pred_check
      _
    $region30: #{tpu_custom_call.1} parent=5 // pred_check_branch
      %181 = sbr.rel (%p178) target = $region32
    $region31: #{tpu_custom_call.1} parent=5 // pred_region
      %s182 = ssub.s32 %s9, 1
      %s183 = smul.u32 16, %s19
      %p184 = scmp.lt.s32.totalorder %s183, 15
      %s185 = scalar_select %p184, %s183, 15
      %s186 = smul.addr %s185, 8
      %s187 = scalar_lea.vmem %s0, %s186
      %p188 = pneg %p47
      %p189 = pneg %p44
      %s190 = smul.u32 16, %s19
      %p191 = scmp.lt.s32.totalorder %s18, 1
      %s192 = scalar_select %p191, %s18, 1
      %p193 = scmp.lt.s32.totalorder %s190, 15
      %s194 = scalar_select %p193, %s190, 15
      %s195 = smul.addr %s192, 16
      %s196 = sadd.s32 %s194, %s195
      %s197 = smul.addr %s196, 4
      %s198 = scalar_lea.vmem %s1, %s197
      %p199 = pneg %p75
      %p200 = pneg %p72
      %p201 = scmp.lt.s32.totalorder %s18, 1
      %s202 = scalar_select %p201, %s18, 1
      %s203 = smul.addr %s202, 4
      %s204 = smul.addr %s203, 4
      %s205 = scalar_lea.vmem %s2, %s204
      %p206 = pneg %p101
      %p207 = pneg %p98
      %p208 = pneg %p127
      %p209 = pneg %p124
      %p210 = scmp.lt.s32.totalorder %s18, 1
      %s211 = scalar_select %p210, %s18, 1
      %s212 = scalar_lea.vmem %s3, %s211
      %s213 = smul.u32 16, %s19
      %p214 = scmp.lt.s32.totalorder %s213, 15
      %s215 = scalar_select %p214, %s213, 15
      %s216 = smul.addr %s215, 8
      %s217 = scalar_lea.vmem %s0, %s216
      %s218 = smul.u32 16, %s19
      %s219 = smul.u32 16, %s19
      %p220 = scmp.lt.s32.totalorder %s18, 1
      %s221 = scalar_select %p220, %s18, 1
      %p222 = scmp.lt.s32.totalorder %s219, 15
      %s223 = scalar_select %p222, %s219, 15
      %s224 = smul.addr %s221, 16
      %s225 = sadd.s32 %s223, %s224
      %s226 = smul.addr %s225, 4
      %s227 = scalar_lea.vmem %s1, %s226
      %s228 = smul.u32 16, %s19
      %p229 = scmp.lt.s32.totalorder %s18, 1
      %s230 = scalar_select %p229, %s18, 1
      %s231 = smul.addr %s230, 4
      %s232 = smul.addr %s231, 4
      %s233 = scalar_lea.vmem %s2, %s232
      %p234 = scmp.lt.s32.totalorder %s18, 1
      %s235 = scalar_select %p234, %s18, 1
      %s236 = scalar_lea.vmem %s3, %s235
      %s238 = smul.u32 %s19, 128
      %v239 = vld [vmem:[%s227] sm:$0xf]
      %v240 = vld [vmem:[%s227 + $0x4] sm:$0xf]
      %v241 = vld [vmem:[%s227 + $0x8] sm:$0xf]
      %v242 = vld [vmem:[%s227 + $0xc] sm:$0xf]
      %v243 = vld [vmem:[%s227 + $0x10] sm:$0xf]
      %v244 = vld [vmem:[%s227 + $0x14] sm:$0xf]
      %v245 = vld [vmem:[%s227 + $0x18] sm:$0xf]
      %v246 = vld [vmem:[%s227 + $0x1c] sm:$0xf]
      %v247 = vld [vmem:[%s227 + $0x20] sm:$0xf]
      %v248 = vld [vmem:[%s227 + $0x24] sm:$0xf]
      %v249 = vld [vmem:[%s227 + $0x28] sm:$0xf]
      %v250 = vld [vmem:[%s227 + $0x2c] sm:$0xf]
      %v251 = vld [vmem:[%s227 + $0x30] sm:$0xf]
      %v252 = vld [vmem:[%s227 + $0x34] sm:$0xf]
      %v253 = vld [vmem:[%s227 + $0x38] sm:$0xf]
      %v254 = vld [vmem:[%s227 + $0x3c] sm:$0xf]
      %v255 = vld [vmem:[%s233] sm:$0xf]
      %v256 = vld [vmem:[%s233 + $0x4] sm:$0xf]
      %v257 = vld [vmem:[%s233 + $0x8] sm:$0xf]
      %v258 = vld [vmem:[%s233 + $0xc] sm:$0xf]
      %v275 = vunpack.c.l.b16 %v239
      %v276 = vunpack.c.l.b16 %v240
      %v277 = vunpack.c.l.b16 %v241
      %v278 = vunpack.c.l.b16 %v242
      %v279 = vunpack.c.l.b16 %v243
      %v280 = vunpack.c.l.b16 %v244
      %v281 = vunpack.c.l.b16 %v245
      %v282 = vunpack.c.l.b16 %v246
      %v283 = vunpack.c.l.b16 %v247
      %v284 = vunpack.c.l.b16 %v248
      %v285 = vunpack.c.l.b16 %v249
      %v286 = vunpack.c.l.b16 %v250
      %v287 = vunpack.c.l.b16 %v251
      %v288 = vunpack.c.l.b16 %v252
      %v289 = vunpack.c.l.b16 %v253
      %v290 = vunpack.c.l.b16 %v254
      %v291 = vpack.c.b16 %v276, %v275
      %v292 = vpack.c.b16 %v278, %v277
      %v293 = vpack.c.b16 %v280, %v279
      %v294 = vpack.c.b16 %v282, %v281
      %v295 = vpack.c.b16 %v284, %v283
      %v296 = vpack.c.b16 %v286, %v285
      %v297 = vpack.c.b16 %v288, %v287
      %v298 = vpack.c.b16 %v290, %v289
      %v303 = vunpack.c.l.b16 %v255
      %v304 = vunpack.c.l.b16 %v256
      %v305 = vunpack.c.l.b16 %v257
      %v306 = vunpack.c.l.b16 %v258
      %v307 = vpack.c.b16 %v304, %v303
      %v308 = vpack.c.b16 %v306, %v305
      %vm311 = vcmask 261120
      %v313 = vsel %vm311, %v291, 0
      %v316 = vsel %vm311, %v292, 0
      %v319 = vsel %vm311, %v293, 0
      %v322 = vsel %vm311, %v294, 0
      %v325 = vsel %vm311, %v295, 0
      %v328 = vsel %vm311, %v296, 0
      %v331 = vsel %vm311, %v297, 0
      %v334 = vsel %vm311, %v298, 0
      %336 = vmatprep.subr.bf16.mxu0 0
      %337 = vmatpush1.bf16.msra.mxu0 %v307
      %338 = vmatprep.subr.bf16.mxu0 0
      %339 = vmatpush1.bf16.msra.mxu0 %v308
      %340 = vmatprep.subr.bf16.mxu0 0
      %341 = vmatpush1.bf16.msra.mxu0 0
      %342 = vmatprep.subr.bf16.mxu0 0
      %343 = vmatpush1.bf16.msra.mxu0 0
      %344 = vmatprep.subr.bf16.mxu0 0
      %345 = vmatpush1.bf16.msra.mxu0 0
      %346 = vmatprep.subr.bf16.mxu0 0
      %347 = vmatpush1.bf16.msra.mxu0 0
      %348 = vmatprep.subr.bf16.mxu0 0
      %349 = vmatpush1.bf16.msra.mxu0 0
      %350 = vmatprep.subr.bf16.mxu0 0
      %351 = vmatpush1.bf16.msra.mxu0 0
      %352 = vmatprep.subr.bf16.mxu0 0
      %353 = vmatpush1.bf16.msra.mxu0 0
      %354 = vmatprep.subr.bf16.mxu0 0
      %355 = vmatpush1.bf16.msra.mxu0 0
      %356 = vmatprep.subr.bf16.mxu0 0
      %357 = vmatpush1.bf16.msra.mxu0 0
      %358 = vmatprep.subr.bf16.mxu0 0
      %359 = vmatpush1.bf16.msra.mxu0 0
      %360 = vmatprep.subr.bf16.mxu0 0
      %361 = vmatpush1.bf16.msra.mxu0 0
      %362 = vmatprep.subr.bf16.mxu0 0
      %363 = vmatpush1.bf16.msra.mxu0 0
      %364 = vmatprep.subr.bf16.mxu0 0
      %365 = vmatpush1.bf16.msra.mxu0 0
      %366 = vmatprep.subr.bf16.mxu0 0
      %367 = vmatpush1.bf16.msra.mxu0 0
      %368 = vmatprep.mubr.bf16.mxu0 0
      %369 = vmatmul.mubr.bf16.gmra.mrb[0].mxu0 %v313
      %v370 = vpop.f32.mrb[0].mxu0
      %v371 = vadd.f32 0.0, %v370
      %v372 = vpop.f32.mrb[0].mxu0
      %v373 = vpop.f32.mrb[0].mxu0
      %v374 = vadd.f32 0.0, %v373
      %v375 = vpop.f32.mrb[0].mxu0
      %376 = vmatprep.mubr.bf16.mxu0 0
      %377 = vmatmul.mubr.bf16.gmra.mrb[0].mxu0 %v316
      %v378 = vpop.f32.mrb[0].mxu0
      %v379 = vadd.f32 0.0, %v378
      %v380 = vpop.f32.mrb[0].mxu0
      %v381 = vpop.f32.mrb[0].mxu0
      %v382 = vadd.f32 0.0, %v381
      %v383 = vpop.f32.mrb[0].mxu0
      %384 = vmatprep.mubr.bf16.mxu0 0
      %385 = vmatmul.mubr.bf16.gmra.mrb[0].mxu0 %v319
      %v386 = vpop.f32.mrb[0].mxu0
      %v387 = vadd.f32 0.0, %v386
      %v388 = vpop.f32.mrb[0].mxu0
      %v389 = vpop.f32.mrb[0].mxu0
      %v390 = vadd.f32 0.0, %v389
      %v391 = vpop.f32.mrb[0].mxu0
      %392 = vmatprep.mubr.bf16.mxu0 0
      %393 = vmatmul.mubr.bf16.gmra.mrb[0].mxu0 %v322
      %v394 = vpop.f32.mrb[0].mxu0
      %v395 = vadd.f32 0.0, %v394
      %v396 = vpop.f32.mrb[0].mxu0
      %v397 = vpop.f32.mrb[0].mxu0
      %v398 = vadd.f32 0.0, %v397
      %v399 = vpop.f32.mrb[0].mxu0
      %400 = vmatprep.mubr.bf16.mxu0 0
      %401 = vmatmul.mubr.bf16.gmra.mrb[0].mxu0 %v325
      %v402 = vpop.f32.mrb[0].mxu0
      %v403 = vadd.f32 0.0, %v402
      %v404 = vpop.f32.mrb[0].mxu0
      %v405 = vpop.f32.mrb[0].mxu0
      %v406 = vadd.f32 0.0, %v405
      %v407 = vpop.f32.mrb[0].mxu0
      %408 = vmatprep.mubr.bf16.mxu0 0
      %409 = vmatmul.mubr.bf16.gmra.mrb[0].mxu0 %v328
      %v410 = vpop.f32.mrb[0].mxu0
      %v411 = vadd.f32 0.0, %v410
      %v412 = vpop.f32.mrb[0].mxu0
      %v413 = vpop.f32.mrb[0].mxu0
      %v414 = vadd.f32 0.0, %v413
      %v415 = vpop.f32.mrb[0].mxu0
      %416 = vmatprep.mubr.bf16.mxu0 0
      %417 = vmatmul.mubr.bf16.gmra.mrb[0].mxu0 %v331
      %v418 = vpop.f32.mrb[0].mxu0
      %v419 = vadd.f32 0.0, %v418
      %v420 = vpop.f32.mrb[0].mxu0
      %v421 = vpop.f32.mrb[0].mxu0
      %v422 = vadd.f32 0.0, %v421
      %v423 = vpop.f32.mrb[0].mxu0
      %424 = vmatprep.mubr.bf16.mxu0 0
      %425 = vmatmul.mubr.bf16.gmra.mrb[0].mxu0 %v334
      %v426 = vpop.f32.mrb[0].mxu0
      %v427 = vadd.f32 0.0, %v426
      %v428 = vpop.f32.mrb[0].mxu0
      %v429 = vpop.f32.mrb[0].mxu0
      %v430 = vadd.f32 0.0, %v429
      %v431 = vpop.f32.mrb[0].mxu0
      %432 = vdwg.mxu0
      %v433 = vlaneseq
      %v434 = vshrl.u32 %v433, 7
      %v435 = vadd.s32 %v434, 8
      %v436 = vadd.s32 %v434, 16
      %v437 = vadd.s32 %v434, 24
      %v438 = vadd.s32 %v434, 32
      %v439 = vadd.s32 %v434, 40
      %v440 = vadd.s32 %v434, 48
      %v441 = vadd.s32 %v434, 56
      %v442 = vadd.s32 %v434, 64
      %v443 = vadd.s32 %v434, 72
      %v444 = vadd.s32 %v434, 80
      %v445 = vadd.s32 %v434, 88
      %v446 = vadd.s32 %v434, 96
      %v447 = vadd.s32 %v434, 104
      %v448 = vadd.s32 %v434, 112
      %v449 = vadd.s32 %v434, 120
      %v450 = vstv %s238
      %v451 = vadd.s32 %v450, %v434
      %v452 = vadd.s32 %v450, %v435
      %v453 = vadd.s32 %v450, %v436
      %v454 = vadd.s32 %v450, %v437
      %v455 = vadd.s32 %v450, %v438
      %v456 = vadd.s32 %v450, %v439
      %v457 = vadd.s32 %v450, %v440
      %v458 = vadd.s32 %v450, %v441
      %v459 = vadd.s32 %v450, %v442
      %v460 = vadd.s32 %v450, %v443
      %v461 = vadd.s32 %v450, %v444
      %v462 = vadd.s32 %v450, %v445
      %v463 = vadd.s32 %v450, %v446
      %v464 = vadd.s32 %v450, %v447
      %v465 = vadd.s32 %v450, %v448
      %v466 = vadd.s32 %v450, %v449
      %v467 = vlaneseq
      %v468 = vand.u32 %v467, 127
      %vm469 = vcmp.ne.s32.totalorder %v468, %v451
      %vm470 = vcmp.ne.s32.totalorder %v468, %v452
      %vm471 = vcmp.ne.s32.totalorder %v468, %v453
      %vm472 = vcmp.ne.s32.totalorder %v468, %v454
      %vm473 = vcmp.ne.s32.totalorder %v468, %v455
      %vm474 = vcmp.ne.s32.totalorder %v468, %v456
      %vm475 = vcmp.ne.s32.totalorder %v468, %v457
      %vm476 = vcmp.ne.s32.totalorder %v468, %v458
      %vm477 = vcmp.ne.s32.totalorder %v468, %v459
      %vm478 = vcmp.ne.s32.totalorder %v468, %v460
      %vm479 = vcmp.ne.s32.totalorder %v468, %v461
      %vm480 = vcmp.ne.s32.totalorder %v468, %v462
      %vm481 = vcmp.ne.s32.totalorder %v468, %v463
      %vm482 = vcmp.ne.s32.totalorder %v468, %v464
      %vm483 = vcmp.ne.s32.totalorder %v468, %v465
      %vm484 = vcmp.ne.s32.totalorder %v468, %v466
      %vm485 = vcmp.lt.s32.totalorder %v468, 8
      %vm486 = vmand %vm469, %vm485
      %vm487 = vmand %vm470, %vm485
      %vm488 = vmand %vm471, %vm485
      %vm489 = vmand %vm472, %vm485
      %vm490 = vmand %vm473, %vm485
      %vm491 = vmand %vm474, %vm485
      %vm492 = vmand %vm475, %vm485
      %vm493 = vmand %vm476, %vm485
      %vm494 = vmand %vm477, %vm485
      %vm495 = vmand %vm478, %vm485
      %vm496 = vmand %vm479, %vm485
      %vm497 = vmand %vm480, %vm485
      %vm498 = vmand %vm481, %vm485
      %vm499 = vmand %vm482, %vm485
      %vm500 = vmand %vm483, %vm485
      %vm501 = vmand %vm484, %vm485
      %v502 = vsel %vm486, %v371, -1e+30
      %v503 = vsel %vm487, %v374, -1e+30
      %v504 = vsel %vm488, %v379, -1e+30
      %v505 = vsel %vm489, %v382, -1e+30
      %v506 = vsel %vm490, %v387, -1e+30
      %v507 = vsel %vm491, %v390, -1e+30
      %v508 = vsel %vm492, %v395, -1e+30
      %v509 = vsel %vm493, %v398, -1e+30
      %v510 = vsel %vm494, %v403, -1e+30
      %v511 = vsel %vm495, %v406, -1e+30
      %v512 = vsel %vm496, %v411, -1e+30
      %v513 = vsel %vm497, %v414, -1e+30
      %v514 = vsel %vm498, %v419, -1e+30
      %v515 = vsel %vm499, %v422, -1e+30
      %v516 = vsel %vm500, %v427, -1e+30
      %v517 = vsel %vm501, %v430, -1e+30
      %v518 = vsub.f32 %v502, 1.0
      %v519 = vsub.f32 %v503, 1.0
      %v520 = vsub.f32 %v504, 1.0
      %v521 = vsub.f32 %v505, 1.0
      %v522 = vsub.f32 %v506, 1.0
      %v523 = vsub.f32 %v507, 1.0
      %v524 = vsub.f32 %v508, 1.0
      %v525 = vsub.f32 %v509, 1.0
      %v526 = vsub.f32 %v510, 1.0
      %v527 = vsub.f32 %v511, 1.0
      %v528 = vsub.f32 %v512, 1.0
      %v529 = vsub.f32 %v513, 1.0
      %v530 = vsub.f32 %v514, 1.0
      %v531 = vsub.f32 %v515, 1.0
      %v532 = vsub.f32 %v516, 1.0
      %v533 = vsub.f32 %v517, 1.0
      %v534 = vmul.f32 %v518, 2.0
      %v535 = vmul.f32 %v519, 2.0
      %v536 = vmul.f32 %v520, 2.0
      %v537 = vmul.f32 %v521, 2.0
      %v538 = vmul.f32 %v522, 2.0
      %v539 = vmul.f32 %v523, 2.0
      %v540 = vmul.f32 %v524, 2.0
      %v541 = vmul.f32 %v525, 2.0
      %v542 = vmul.f32 %v526, 2.0
      %v543 = vmul.f32 %v527, 2.0
      %v544 = vmul.f32 %v528, 2.0
      %v545 = vmul.f32 %v529, 2.0
      %v546 = vmul.f32 %v530, 2.0
      %v547 = vmul.f32 %v531, 2.0
      %v548 = vmul.f32 %v532, 2.0
      %v549 = vmul.f32 %v533, 2.0
      %v550 = vmul.f32 %v534, 1.442695
      %v551 = vpow.pop %v550
      %v552 = vmul.f32 %v535, 1.442695
      %v553 = vpow.pop %v552
      %v554 = vmul.f32 %v536, 1.442695
      %v555 = vpow.pop %v554
      %v556 = vmul.f32 %v537, 1.442695
      %v557 = vpow.pop %v556
      %v558 = vmul.f32 %v538, 1.442695
      %v559 = vpow.pop %v558
      %v560 = vmul.f32 %v539, 1.442695
      %v561 = vpow.pop %v560
      %v562 = vmul.f32 %v540, 1.442695
      %v563 = vpow.pop %v562
      %v564 = vmul.f32 %v541, 1.442695
      %v565 = vpow.pop %v564
      %v566 = vmul.f32 %v542, 1.442695
      %v567 = vpow.pop %v566
      %v568 = vmul.f32 %v543, 1.442695
      %v569 = vpow.pop %v568
      %v570 = vmul.f32 %v544, 1.442695
      %v571 = vpow.pop %v570
      %v572 = vmul.f32 %v545, 1.442695
      %v573 = vpow.pop %v572
      %v574 = vmul.f32 %v546, 1.442695
      %v575 = vpow.pop %v574
      %v576 = vmul.f32 %v547, 1.442695
      %v577 = vpow.pop %v576
      %v578 = vmul.f32 %v548, 1.442695
      %v579 = vpow.pop %v578
      %v580 = vmul.f32 %v549, 1.442695
      %v581 = vpow.pop %v580
      %582 = vadd.xlane.f32.xlu0 %v551
      %v583 = vpop.xlane.xlu0 %582
      %584 = vadd.xlane.f32.xlu0 %v553
      %v585 = vpop.xlane.xlu0 %584
      %586 = vadd.xlane.f32.xlu0 %v555
      %v587 = vpop.xlane.xlu0 %586
      %588 = vadd.xlane.f32.xlu0 %v557
      %v589 = vpop.xlane.xlu0 %588
      %590 = vadd.xlane.f32.xlu0 %v559
      %v591 = vpop.xlane.xlu0 %590
      %592 = vadd.xlane.f32.xlu0 %v561
      %v593 = vpop.xlane.xlu0 %592
      %594 = vadd.xlane.f32.xlu0 %v563
      %v595 = vpop.xlane.xlu0 %594
      %596 = vadd.xlane.f32.xlu0 %v565
      %v597 = vpop.xlane.xlu0 %596
      %598 = vadd.xlane.f32.xlu0 %v567
      %v599 = vpop.xlane.xlu0 %598
      %600 = vadd.xlane.f32.xlu0 %v569
      %v601 = vpop.xlane.xlu0 %600
      %602 = vadd.xlane.f32.xlu0 %v571
      %v603 = vpop.xlane.xlu0 %602
      %604 = vadd.xlane.f32.xlu0 %v573
      %v605 = vpop.xlane.xlu0 %604
      %606 = vadd.xlane.f32.xlu0 %v575
      %v607 = vpop.xlane.xlu0 %606
      %608 = vadd.xlane.f32.xlu0 %v577
      %v609 = vpop.xlane.xlu0 %608
      %610 = vadd.xlane.f32.xlu0 %v579
      %v611 = vpop.xlane.xlu0 %610
      %612 = vadd.xlane.f32.xlu0 %v581
      %v613 = vpop.xlane.xlu0 %612
      %v614 = vlog2.pop %v583
      %v615 = vmul.f32 %v614, 0.6931472
      %v616 = vlog2.pop %v585
      %v617 = vmul.f32 %v616, 0.6931472
      %v618 = vlog2.pop %v587
      %v619 = vmul.f32 %v618, 0.6931472
      %v620 = vlog2.pop %v589
      %v621 = vmul.f32 %v620, 0.6931472
      %v622 = vlog2.pop %v591
      %v623 = vmul.f32 %v622, 0.6931472
      %v624 = vlog2.pop %v593
      %v625 = vmul.f32 %v624, 0.6931472
      %v626 = vlog2.pop %v595
      %v627 = vmul.f32 %v626, 0.6931472
      %v628 = vlog2.pop %v597
      %v629 = vmul.f32 %v628, 0.6931472
      %v630 = vlog2.pop %v599
      %v631 = vmul.f32 %v630, 0.6931472
      %v632 = vlog2.pop %v601
      %v633 = vmul.f32 %v632, 0.6931472
      %v634 = vlog2.pop %v603
      %v635 = vmul.f32 %v634, 0.6931472
      %v636 = vlog2.pop %v605
      %v637 = vmul.f32 %v636, 0.6931472
      %v638 = vlog2.pop %v607
      %v639 = vmul.f32 %v638, 0.6931472
      %v640 = vlog2.pop %v609
      %v641 = vmul.f32 %v640, 0.6931472
      %v642 = vlog2.pop %v611
      %v643 = vmul.f32 %v642, 0.6931472
      %v644 = vlog2.pop %v613
      %v645 = vmul.f32 %v644, 0.6931472
      %v646 = vadd.f32 %v615, 2.0
      %v647 = vadd.f32 %v617, 2.0
      %v648 = vadd.f32 %v619, 2.0
      %v649 = vadd.f32 %v621, 2.0
      %v650 = vadd.f32 %v623, 2.0
      %v651 = vadd.f32 %v625, 2.0
      %v652 = vadd.f32 %v627, 2.0
      %v653 = vadd.f32 %v629, 2.0
      %v654 = vadd.f32 %v631, 2.0
      %v655 = vadd.f32 %v633, 2.0
      %v656 = vadd.f32 %v635, 2.0
      %v657 = vadd.f32 %v637, 2.0
      %v658 = vadd.f32 %v639, 2.0
      %v659 = vadd.f32 %v641, 2.0
      %v660 = vadd.f32 %v643, 2.0
      %v661 = vadd.f32 %v645, 2.0
      %v662 = vld [vmem:[%s217] sm:$0xff]
      %v663 = vld [vmem:[%s217 + $0x8] sm:$0xff]
      %v664 = vld [vmem:[%s217 + $0x10] sm:$0xff]
      %v665 = vld [vmem:[%s217 + $0x18] sm:$0xff]
      %v666 = vld [vmem:[%s217 + $0x20] sm:$0xff]
      %v667 = vld [vmem:[%s217 + $0x28] sm:$0xff]
      %v668 = vld [vmem:[%s217 + $0x30] sm:$0xff]
      %v669 = vld [vmem:[%s217 + $0x38] sm:$0xff]
      %v670 = vld [vmem:[%s217 + $0x40] sm:$0xff]
      %v671 = vld [vmem:[%s217 + $0x48] sm:$0xff]
      %v672 = vld [vmem:[%s217 + $0x50] sm:$0xff]
      %v673 = vld [vmem:[%s217 + $0x58] sm:$0xff]
      %v674 = vld [vmem:[%s217 + $0x60] sm:$0xff]
      %v675 = vld [vmem:[%s217 + $0x68] sm:$0xff]
      %v676 = vld [vmem:[%s217 + $0x70] sm:$0xff]
      %v677 = vld [vmem:[%s217 + $0x78] sm:$0xff]
      %678 = vset.pattern.permute.xlu0 0
      %679 = vperm.xlu0 %678, %v662
      %v680 = vpop.permute.xlu0 %679
      %681 = vset.pattern.permute.xlu0 0
      %682 = vperm.xlu0 %681, %v663
      %v683 = vpop.permute.xlu0 %682
      %684 = vset.pattern.permute.xlu0 0
      %685 = vperm.xlu0 %684, %v664
      %v686 = vpop.permute.xlu0 %685
      %687 = vset.pattern.permute.xlu0 0
      %688 = vperm.xlu0 %687, %v665
      %v689 = vpop.permute.xlu0 %688
      %690 = vset.pattern.permute.xlu0 0
      %691 = vperm.xlu0 %690, %v666
      %v692 = vpop.permute.xlu0 %691
      %693 = vset.pattern.permute.xlu0 0
      %694 = vperm.xlu0 %693, %v667
      %v695 = vpop.permute.xlu0 %694
      %696 = vset.pattern.permute.xlu0 0
      %697 = vperm.xlu0 %696, %v668
      %v698 = vpop.permute.xlu0 %697
      %699 = vset.pattern.permute.xlu0 0
      %700 = vperm.xlu0 %699, %v669
      %v701 = vpop.permute.xlu0 %700
      %702 = vset.pattern.permute.xlu0 0
      %703 = vperm.xlu0 %702, %v670
      %v704 = vpop.permute.xlu0 %703
      %705 = vset.pattern.permute.xlu0 0
      %706 = vperm.xlu0 %705, %v671
      %v707 = vpop.permute.xlu0 %706
      %708 = vset.pattern.permute.xlu0 0
      %709 = vperm.xlu0 %708, %v672
      %v710 = vpop.permute.xlu0 %709
      %711 = vset.pattern.permute.xlu0 0
      %712 = vperm.xlu0 %711, %v673
      %v713 = vpop.permute.xlu0 %712
      %714 = vset.pattern.permute.xlu0 0
      %715 = vperm.xlu0 %714, %v674
      %v716 = vpop.permute.xlu0 %715
      %717 = vset.pattern.permute.xlu0 0
      %718 = vperm.xlu0 %717, %v675
      %v719 = vpop.permute.xlu0 %718
      %720 = vset.pattern.permute.xlu0 0
      %721 = vperm.xlu0 %720, %v676
      %v722 = vpop.permute.xlu0 %721
      %723 = vset.pattern.permute.xlu0 0
      %724 = vperm.xlu0 %723, %v677
      %v725 = vpop.permute.xlu0 %724
      %vm726 = vcmp.eq.s32.totalorder %v468, %v680
      %vm727 = vcmp.eq.s32.totalorder %v468, %v683
      %vm728 = vcmp.eq.s32.totalorder %v468, %v686
      %vm729 = vcmp.eq.s32.totalorder %v468, %v689
      %vm730 = vcmp.eq.s32.totalorder %v468, %v692
      %vm731 = vcmp.eq.s32.totalorder %v468, %v695
      %vm732 = vcmp.eq.s32.totalorder %v468, %v698
      %vm733 = vcmp.eq.s32.totalorder %v468, %v701
      %vm734 = vcmp.eq.s32.totalorder %v468, %v704
      %vm735 = vcmp.eq.s32.totalorder %v468, %v707
      %vm736 = vcmp.eq.s32.totalorder %v468, %v710
      %vm737 = vcmp.eq.s32.totalorder %v468, %v713
      %vm738 = vcmp.eq.s32.totalorder %v468, %v716
      %vm739 = vcmp.eq.s32.totalorder %v468, %v719
      %vm740 = vcmp.eq.s32.totalorder %v468, %v722
      %vm741 = vcmp.eq.s32.totalorder %v468, %v725
      %v742 = vsel %vm726, %v371, 0.0
      %v743 = vsel %vm727, %v374, 0.0
      %v744 = vsel %vm728, %v379, 0.0
      %v745 = vsel %vm729, %v382, 0.0
      %v746 = vsel %vm730, %v387, 0.0
      %v747 = vsel %vm731, %v390, 0.0
      %v748 = vsel %vm732, %v395, 0.0
      %v749 = vsel %vm733, %v398, 0.0
      %v750 = vsel %vm734, %v403, 0.0
      %v751 = vsel %vm735, %v406, 0.0
      %v752 = vsel %vm736, %v411, 0.0
      %v753 = vsel %vm737, %v414, 0.0
      %v754 = vsel %vm738, %v419, 0.0
      %v755 = vsel %vm739, %v422, 0.0
      %v756 = vsel %vm740, %v427, 0.0
      %v757 = vsel %vm741, %v430, 0.0
      %758 = vadd.xlane.f32.xlu0 %v742
      %v759 = vpop.xlane.xlu0 %758
      %760 = vadd.xlane.f32.xlu0 %v743
      %v761 = vpop.xlane.xlu0 %760
      %762 = vadd.xlane.f32.xlu0 %v744
      %v763 = vpop.xlane.xlu0 %762
      %764 = vadd.xlane.f32.xlu0 %v745
      %v765 = vpop.xlane.xlu0 %764
      %766 = vadd.xlane.f32.xlu0 %v746
      %v767 = vpop.xlane.xlu0 %766
      %768 = vadd.xlane.f32.xlu0 %v747
      %v769 = vpop.xlane.xlu0 %768
      %770 = vadd.xlane.f32.xlu0 %v748
      %v771 = vpop.xlane.xlu0 %770
      %772 = vadd.xlane.f32.xlu0 %v749
      %v773 = vpop.xlane.xlu0 %772
      %774 = vadd.xlane.f32.xlu0 %v750
      %v775 = vpop.xlane.xlu0 %774
      %776 = vadd.xlane.f32.xlu0 %v751
      %v777 = vpop.xlane.xlu0 %776
      %778 = vadd.xlane.f32.xlu0 %v752
      %v779 = vpop.xlane.xlu0 %778
      %780 = vadd.xlane.f32.xlu0 %v753
      %v781 = vpop.xlane.xlu0 %780
      %782 = vadd.xlane.f32.xlu0 %v754
      %v783 = vpop.xlane.xlu0 %782
      %784 = vadd.xlane.f32.xlu0 %v755
      %v785 = vpop.xlane.xlu0 %784
      %786 = vadd.xlane.f32.xlu0 %v756
      %v787 = vpop.xlane.xlu0 %786
      %788 = vadd.xlane.f32.xlu0 %v757
      %v789 = vpop.xlane.xlu0 %788
      %v790 = vmul.f32 %v759, 2.0
      %v791 = vmul.f32 %v761, 2.0
      %v792 = vmul.f32 %v763, 2.0
      %v793 = vmul.f32 %v765, 2.0
      %v794 = vmul.f32 %v767, 2.0
      %v795 = vmul.f32 %v769, 2.0
      %v796 = vmul.f32 %v771, 2.0
      %v797 = vmul.f32 %v773, 2.0
      %v798 = vmul.f32 %v775, 2.0
      %v799 = vmul.f32 %v777, 2.0
      %v800 = vmul.f32 %v779, 2.0
      %v801 = vmul.f32 %v781, 2.0
      %v802 = vmul.f32 %v783, 2.0
      %v803 = vmul.f32 %v785, 2.0
      %v804 = vmul.f32 %v787, 2.0
      %v805 = vmul.f32 %v789, 2.0
      %v806 = vsub.f32 %v646, %v790
      %v807 = vsub.f32 %v647, %v791
      %v808 = vsub.f32 %v648, %v792
      %v809 = vsub.f32 %v649, %v793
      %v810 = vsub.f32 %v650, %v794
      %v811 = vsub.f32 %v651, %v795
      %v812 = vsub.f32 %v652, %v796
      %v813 = vsub.f32 %v653, %v797
      %v814 = vsub.f32 %v654, %v798
      %v815 = vsub.f32 %v655, %v799
      %v816 = vsub.f32 %v656, %v800
      %v817 = vsub.f32 %v657, %v801
      %v818 = vsub.f32 %v658, %v802
      %v819 = vsub.f32 %v659, %v803
      %v820 = vsub.f32 %v660, %v804
      %v821 = vsub.f32 %v661, %v805
      %vm822 = vcmp.lt.s32.totalorder %v451, 8
      %vm823 = vcmp.lt.s32.totalorder %v452, 8
      %vm824 = vcmp.lt.s32.totalorder %v453, 8
      %vm825 = vcmp.lt.s32.totalorder %v454, 8
      %vm826 = vcmp.lt.s32.totalorder %v455, 8
      %vm827 = vcmp.lt.s32.totalorder %v456, 8
      %vm828 = vcmp.lt.s32.totalorder %v457, 8
      %vm829 = vcmp.lt.s32.totalorder %v458, 8
      %vm830 = vcmp.lt.s32.totalorder %v459, 8
      %vm831 = vcmp.lt.s32.totalorder %v460, 8
      %vm832 = vcmp.lt.s32.totalorder %v461, 8
      %vm833 = vcmp.lt.s32.totalorder %v462, 8
      %vm834 = vcmp.lt.s32.totalorder %v463, 8
      %vm835 = vcmp.lt.s32.totalorder %v464, 8
      %vm836 = vcmp.lt.s32.totalorder %v465, 8
      %vm837 = vcmp.lt.s32.totalorder %v466, 8
      %v838 = vsel %vm822, %v806, 0.0
      %v839 = vsel %vm823, %v807, 0.0
      %v840 = vsel %vm824, %v808, 0.0
      %v841 = vsel %vm825, %v809, 0.0
      %v842 = vsel %vm826, %v810, 0.0
      %v843 = vsel %vm827, %v811, 0.0
      %v844 = vsel %vm828, %v812, 0.0
      %v845 = vsel %vm829, %v813, 0.0
      %v846 = vsel %vm830, %v814, 0.0
      %v847 = vsel %vm831, %v815, 0.0
      %v848 = vsel %vm832, %v816, 0.0
      %v849 = vsel %vm833, %v817, 0.0
      %v850 = vsel %vm834, %v818, 0.0
      %v851 = vsel %vm835, %v819, 0.0
      %v852 = vsel %vm836, %v820, 0.0
      %v853 = vsel %vm837, %v821, 0.0
      %vm854 = vcmask 7168
      %v855 = vsel %vm854, %v838, 0.0
      %v856 = vsel %vm854, %v839, 0.0
      %v857 = vadd.f32 %v855, %v856
      %v858 = vsel %vm854, %v840, 0.0
      %v859 = vadd.f32 %v857, %v858
      %v860 = vsel %vm854, %v841, 0.0
      %v861 = vadd.f32 %v859, %v860
      %v862 = vsel %vm854, %v842, 0.0
      %v863 = vadd.f32 %v861, %v862
      %v864 = vsel %vm854, %v843, 0.0
      %v865 = vadd.f32 %v863, %v864
      %v866 = vsel %vm854, %v844, 0.0
      %v867 = vadd.f32 %v865, %v866
      %v868 = vsel %vm854, %v845, 0.0
      %v869 = vadd.f32 %v867, %v868
      %v870 = vsel %vm854, %v846, 0.0
      %v871 = vadd.f32 %v869, %v870
      %v872 = vsel %vm854, %v847, 0.0
      %v873 = vadd.f32 %v871, %v872
      %v874 = vsel %vm854, %v848, 0.0
      %v875 = vadd.f32 %v873, %v874
      %v876 = vsel %vm854, %v849, 0.0
      %v877 = vadd.f32 %v875, %v876
      %v878 = vsel %vm854, %v850, 0.0
      %v879 = vadd.f32 %v877, %v878
      %v880 = vsel %vm854, %v851, 0.0
      %v881 = vadd.f32 %v879, %v880
      %v882 = vsel %vm854, %v852, 0.0
      %v883 = vadd.f32 %v881, %v882
      %v884 = vsel %vm854, %v853, 0.0
      %v885 = vadd.f32 %v883, %v884
      %886 = vadd.xlane.f32.xlu0 %v885
      %v887 = vpop.xlane.xlu0 %886
      %v888 = vrot.slane %v887, 4
      %v889 = vadd.f32 %v887, %v888
      %v890 = vrot.slane %v889, 2
      %v891 = vadd.f32 %v889, %v890
      %v892 = vrot.slane %v891, 1
      %v893 = vadd.f32 %v891, %v892
      %s894 = vtos %v893
      %p895 = scmp.eq.s32.totalorder %s19, 0
      // Predicated region
      $region33: #{tpu_custom_call.1} parent=31 // pred_check
        %p896 = pneg %p895
      $region34: #{tpu_custom_call.1} parent=31 // pred_check_branch
        %898 = sbr.rel (%p896) target = $region36
      $region35: #{tpu_custom_call.1} parent=31 // pred_region
        %vm899 = vcmask 0
        %900 = vst.msk [vmem:[%s236] sm:$0x1] %vm899, 0.0
      $region36: #{tpu_custom_call.1} parent=31 // pred_fallthru
        _
      %v901 = vld [vmem:[%s236] sm:$0x1]
      %v902 = vstv %s894
      %v903 = vadd.f32 %v901, %v902
      %vm904 = vcmask 0
      %905 = vst.msk [vmem:[%s236] sm:$0x1] %vm904, %v903
      %p906 = scmp.lt.s32.totalorder %s18, 1
      %s907 = scalar_select %p906, %s18, 1
      %s908 = scalar_lea.vmem %s3, %s907
      // Predicated region
      $region37: #{tpu_custom_call.1} parent=31 // pred_check
        %p909 = pneg %p124
      $region38: #{tpu_custom_call.1} parent=31 // pred_check_branch
        %911 = sbr.rel (%p909) target = $region40
      $region39: #{tpu_custom_call.1} parent=31 // pred_region
        _
      $region40: #{tpu_custom_call.1} parent=31 // pred_fallthru
        _
    $region32: #{tpu_custom_call.1} parent=5 // pred_fallthru
      _
    %p912 = scmp.le.s32.totalorder 2, %s9
    // Predicated region
    $region41: #{tpu_custom_call.1} parent=5 // pred_check
      %p913 = pneg %p912
    $region42: #{tpu_custom_call.1} parent=5 // pred_check_branch
      %915 = sbr.rel (%p913) target = $region44
    $region43: #{tpu_custom_call.1} parent=5 // pred_region
      %s916 = ssub.s32 %s9, 2
      // Predicated region
      $region45: #{tpu_custom_call.1} parent=43 // pred_check
        %p917 = pneg %p130
      $region46: #{tpu_custom_call.1} parent=43 // pred_check_branch
        %919 = sbr.rel (%p917) target = $region48
      $region47: #{tpu_custom_call.1} parent=43 // pred_region
        %p920 = scmp.lt.s32.totalorder %s20, 1
        %s921 = scalar_select %p920, %s20, 1
        %s922 = scalar_lea.vmem %s3, %s921
      $region48: #{tpu_custom_call.1} parent=43 // pred_fallthru
        _
    $region44: #{tpu_custom_call.1} parent=5 // pred_fallthru
      _
  $region6: #{tpu_custom_call.1} parent=0 // loop_footer
    %s13 = sadd.s32 1, %s9
  $region7: #{tpu_custom_call.1} parent=0 // loop_footer_branch
    %8 = sbr.rel target = $region3
  $region8: #{tpu_custom_call.1} parent=0 // loop_exit
    _

</llo_original>
